<compile_context>
chip_gen: v7x
topology: tpu7x:2x2x1
jax: 0.10.0
libtpu: 0.0.40
codegen_flags: <defaults>
</compile_context>

<pallas_src>
import math

import jax
import jax.numpy as jnp
from jax import lax
from jax.experimental import pallas as pl
from jax.experimental.pallas import tpu as pltpu

PI = math.pi
_EPS = 1e-6
_LANES = 128
_CHUNK = 32          # sublane rows per in-kernel chunk (bounds live vregs)
_MAX_ROWS = 1024     # 4.5 MiB/step in+out -> ~9 MiB double-buffered (fits v5e)


def _make_kernel(rows, chunk):
    """Build the kernel for a static (rows, chunk) tiling."""
    n_full = rows // chunk
    rem = rows - n_full * chunk

    def kernel(p_ref, x_ref, o_ref):
        # p_ref: SMEM f32[10] = [kd/PI (3), ks (3), a2, 1/(a2+eps), f0, 1-f0]
        # x_ref: VMEM f32[6, rows, 128]  rows = hx, hy, hz, dx, dy, dz
        # o_ref: VMEM f32[3, rows, 128]
        kd0, kd1, kd2 = p_ref[0], p_ref[1], p_ref[2]
        ks0, ks1, ks2 = p_ref[3], p_ref[4], p_ref[5]
        a2, inv_a2 = p_ref[6], p_ref[7]
        f0, omf0 = p_ref[8], p_ref[9]

        def compute(rsl):
            hx = x_ref[0, rsl, :]
            hy = x_ref[1, rsl, :]
            hz = x_ref[2, rsl, :]
            dx = x_ref[3, rsl, :]
            dz = x_ref[5, rsl, :]          # dy (row 4) is never needed

            r2 = hx * hx + hy * hy
            hz2 = hz * hz
            s2 = r2 + hz2
            inv_nh = lax.rsqrt(s2 + _EPS)  # 1/|half|
            nh = s2 * inv_nh               # |half|
            cos_t = hz * inv_nh            # cos(theta_h)
            sin_t = jnp.sqrt(r2) * inv_nh  # sin(theta_h)

            # hd_to_io, z-components only:
            #   wiz = dz*cos_t - dx*sin_t ; wi.h = dz*|h| ; woz = 2*(wi.h)*hz - wiz
            wiz = dz * cos_t - dx * sin_t
            woz = 2.0 * dz * nh * hz - wiz

            ci = jnp.clip(wiz, 0.0, 1.0)
            co = jnp.clip(woz, 0.0, 1.0)

            tan2 = r2 / (hz2 + _EPS)
            d_num = jnp.exp(-tan2 * inv_a2)
            G = jnp.minimum(2.0 * hz * jnp.minimum(ci, co) / (dz + _EPS), 1.0)
            omd = 1.0 - dz
            omd2 = omd * omd
            Fr = f0 + omf0 * omd2 * omd2 * omd

            # D*G*F / (PI*ci*co+eps) with D's and the specular denominator merged
            denom = (a2 * hz2 * hz2 + _EPS) * (PI * ci * co + _EPS)
            spec = d_num * G * Fr / denom

            o_ref[0, rsl, :] = kd0 + spec * ks0
            o_ref[1, rsl, :] = kd1 + spec * ks1
            o_ref[2, rsl, :] = kd2 + spec * ks2

        if n_full > 0:
            def body(j, carry):
                r0 = pl.multiple_of(j * chunk, chunk)
                compute(pl.ds(r0, chunk))
                return carry
            lax.fori_loop(0, n_full, body, 0)
        if rem > 0:
            compute(pl.ds(n_full * chunk, rem))

    return kernel


def _pack_params(params):
    """Raw (pre-sigmoid) f32[8] -> post-activation f32[10] for SMEM."""
    params = jnp.asarray(params, jnp.float32)
    kd = jax.nn.sigmoid(params[0:3])
    ks = jax.nn.sigmoid(params[3:6])
    alpha = jax.nn.sigmoid(params[6])
    f0 = jax.nn.sigmoid(params[7])
    a2 = alpha * alpha
    inv_a2 = 1.0 / (a2 + _EPS)
    tail = jnp.stack([a2, inv_a2, f0, 1.0 - f0])
    return jnp.concatenate([kd / PI, ks, tail]).astype(jnp.float32)


def cook_torrance_forward_cn(x_cn, params, tile_samples=_MAX_ROWS * _LANES):
    """Channels-first entry point (preferred: no wrapper transpose).

    x_cn:   (6, N) float32, rows = hx, hy, hz, dx, dy, dz
    params: (8,)   float32 raw (pre-sigmoid) [kd(3), ks(3), alpha, f0]
    returns (3, N) float32
    """
    x_cn = jnp.asarray(x_cn, jnp.float32)
    n = x_cn.shape[1]
    packed = _pack_params(params)

    nb = -(-n // _LANES)                     # cdiv(n, 128) sublane rows
    n128 = nb * _LANES
    if n128 != n:
        # pad only to a lane multiple (needed for the reshape); hz = dz = 1
        # keeps the pad lanes finite.  No pad-to-tile-boundary concatenate.
        pad = jnp.zeros((6, n128 - n), jnp.float32).at[2].set(1.0).at[5].set(1.0)
        x_cn = jnp.concatenate([x_cn, pad], axis=1)

    # ---- tile-size selection ---------------------------------------------
    rows = max(1, min(tile_samples // _LANES, nb))
    if rows < nb:
        rows = max(_CHUNK, (rows // _CHUNK) * _CHUNK)   # sublane-aligned blocks
    if nb >= 4 * 128:
        # keep >= 4 grid steps for large N (v7x megacore + pipeline overlap)
        cap = max(_CHUNK, ((-(-nb // 4)) // _CHUNK) * _CHUNK)
        rows = min(rows, cap)
    rows = min(rows, _MAX_ROWS)              # ~9 MiB double-buffered: fits v5e
    chunk = min(_CHUNK, rows)

    grid = (-(-nb // rows),)                 # ragged final block: Pallas masks it
    x3 = x_cn.reshape(6, nb, _LANES)         # lane-dense, free reshape

    out3 = pl.pallas_call(
        _make_kernel(rows, chunk),
        out_shape=jax.ShapeDtypeStruct((3, nb, _LANES), jnp.float32),
        grid=grid,
        in_specs=[
            pl.BlockSpec(memory_space=pltpu.MemorySpace.SMEM),      # packed params
            pl.BlockSpec((6, rows, _LANES), lambda i: (0, i, 0)),
        ],
        out_specs=pl.BlockSpec((3, rows, _LANES), lambda i: (0, i, 0)),
        compiler_params=pltpu.CompilerParams(
            dimension_semantics=("parallel",)
        ),
    )(packed, x3)

    out = out3.reshape(3, n128)
    return out if n128 == n else out[:, :n]


def cook_torrance_forward(x, params, tile_samples=_MAX_ROWS * _LANES):
    """PyTorch-layout wrapper: x (N, 6) -> (N, 3).

    Note: the two .T calls are full HBM passes; bandwidth-sensitive callers
    should supply channels-first data via cook_torrance_forward_cn instead.
    """
    out_cn = cook_torrance_forward_cn(
        jnp.asarray(x, jnp.float32).T, params, tile_samples=tile_samples
    )
    return out_cn.T


def _reference_jax(x, params):
    """Pure-JAX reference mirroring the forward (for validation)."""
    kd = jax.nn.sigmoid(params[0:3])
    ks = jax.nn.sigmoid(params[3:6])
    alpha = jax.nn.sigmoid(params[6])
    f0 = jax.nn.sigmoid(params[7])
    hx, hy, hz = x[:, 0], x[:, 1], x[:, 2]
    dx, dz = x[:, 3], x[:, 5]

    r2 = hx * hx + hy * hy
    hz2 = hz * hz
    s2 = r2 + hz2
    inv_nh = lax.rsqrt(s2 + _EPS)
    nh = s2 * inv_nh
    cos_t = hz * inv_nh
    sin_t = jnp.sqrt(r2) * inv_nh
    wiz = dz * cos_t - dx * sin_t
    woz = 2.0 * dz * nh * hz - wiz

    ci = jnp.clip(wiz, 0.0, 1.0)
    co = jnp.clip(woz, 0.0, 1.0)
    a2 = alpha * alpha
    inv_a2 = 1.0 / (a2 + _EPS)
    tan2 = r2 / (hz2 + _EPS)
    d_num = jnp.exp(-tan2 * inv_a2)
    G = jnp.minimum(2.0 * hz * jnp.minimum(ci, co) / (dz + _EPS), 1.0)
    omd = 1.0 - dz
    Fr = f0 + (1.0 - f0) * (omd * omd) * (omd * omd) * omd
    spec = d_num * G * Fr / ((a2 * hz2 * hz2 + _EPS) * (PI * ci * co + _EPS))
    return kd[None, :] / PI + spec[:, None] * ks[None, :]


if __name__ == "__main__":
    key = jax.random.PRNGKey(0)
    kh, kd_, kp = jax.random.split(key, 3)

    def make_x(key_h, key_d, n):
        hv = jax.random.normal(key_h, (n, 3), dtype=jnp.float32)
        hv = hv / jnp.linalg.norm(hv, axis=1, keepdims=True)
        hv = hv.at[:, 2].set(jnp.abs(hv[:, 2]))
        dv = jax.random.normal(key_d, (n, 3), dtype=jnp.float32)
        dv = dv / jnp.linalg.norm(dv, axis=1, keepdims=True)
        dv = dv.at[:, 2].set(jnp.abs(dv[:, 2]))
        return jnp.concatenate([hv, dv], axis=1).astype(jnp.float32)

    # parameters: kd(3), ks(3), alpha(1), f0(1) -- raw pre-sigmoid
    params = jax.random.normal(kp, (8,), dtype=jnp.float32)

    # 1) small ragged N: lane padding path, single grid step
    x1 = make_x(kh, kd_, 421)
    out1 = jax.block_until_ready(cook_torrance_forward(x1, params))
    ref1 = _reference_jax(x1, params)
    assert out1.shape == (421, 3)
    assert jnp.allclose(out1, ref1, rtol=1e-4, atol=1e-5), "mismatch (small N)"

    # 2) multi-step grid with a ragged final block + in-kernel chunk loop
    kh2, kd2 = jax.random.split(kh)
    x2 = make_x(kh2, kd2, 65 * 128)
    out2 = jax.block_until_ready(
        cook_torrance_forward(x2, params, tile_samples=64 * 128)
    )
    ref2 = _reference_jax(x2, params)
    assert out2.shape == (65 * 128, 3)
    assert jnp.allclose(out2, ref2, rtol=1e-4, atol=1e-5), "mismatch (ragged grid)"

    print("KERNEL_OK")
</pallas_src>

<mosaic_0001>
module attributes {stable_mosaic.version = 11 : i64} {
  func.func @kernel(%arg0: i32, %arg1: memref<10xf32, #tpu.memory_space<smem>>, %arg2: memref<6x4x128xf32, #tpu.memory_space<vmem>>, %arg3: memref<3x4x128xf32, #tpu.memory_space<vmem>>) attributes {dimension_semantics = [#tpu.dimension_semantics<parallel>], iteration_bounds = array<i64: 1>, scalar_prefetch = 0 : i64, scratch_operands = 0 : i64, tpu.core_type = #tpu.core_type<tc>, window_params = [{transform_indices = @transform_0, window_bounds = array<i64: 10>}, {transform_indices = @transform_1, window_bounds = array<i64: 6, 4, 128>}, {transform_indices = @transform_2, window_bounds = array<i64: 3, 4, 128>}]} {
    %c0 = arith.constant 0 : index
    %0 = memref.load %arg1[%c0] : memref<10xf32, #tpu.memory_space<smem>>
    %c1 = arith.constant 1 : index
    %1 = memref.load %arg1[%c1] : memref<10xf32, #tpu.memory_space<smem>>
    %c2 = arith.constant 2 : index
    %2 = memref.load %arg1[%c2] : memref<10xf32, #tpu.memory_space<smem>>
    %c3 = arith.constant 3 : index
    %3 = memref.load %arg1[%c3] : memref<10xf32, #tpu.memory_space<smem>>
    %c4 = arith.constant 4 : index
    %4 = memref.load %arg1[%c4] : memref<10xf32, #tpu.memory_space<smem>>
    %c5 = arith.constant 5 : index
    %5 = memref.load %arg1[%c5] : memref<10xf32, #tpu.memory_space<smem>>
    %c6 = arith.constant 6 : index
    %6 = memref.load %arg1[%c6] : memref<10xf32, #tpu.memory_space<smem>>
    %c7 = arith.constant 7 : index
    %7 = memref.load %arg1[%c7] : memref<10xf32, #tpu.memory_space<smem>>
    %c8 = arith.constant 8 : index
    %8 = memref.load %arg1[%c8] : memref<10xf32, #tpu.memory_space<smem>>
    %c9 = arith.constant 9 : index
    %9 = memref.load %arg1[%c9] : memref<10xf32, #tpu.memory_space<smem>>
    %c0_i32 = arith.constant 0 : i32
    %c4_i32 = arith.constant 4 : i32
    %10 = arith.muli %c0_i32, %c4_i32 : i32
    %11 = tpu.assume_multiple %10, 4 : i32
    %c0_0 = arith.constant 0 : index
    %12 = arith.index_cast %11 : i32 to index
    %c0_1 = arith.constant 0 : index
    %13 = vector.load %arg2[%c0_0, %12, %c0_1] : memref<6x4x128xf32, #tpu.memory_space<vmem>>, vector<1x4x128xf32>
    %14 = vector.shape_cast %13 : vector<1x4x128xf32> to vector<4x128xf32>
    %c1_2 = arith.constant 1 : index
    %15 = arith.index_cast %11 : i32 to index
    %c0_3 = arith.constant 0 : index
    %16 = vector.load %arg2[%c1_2, %15, %c0_3] : memref<6x4x128xf32, #tpu.memory_space<vmem>>, vector<1x4x128xf32>
    %17 = vector.shape_cast %16 : vector<1x4x128xf32> to vector<4x128xf32>
    %c2_4 = arith.constant 2 : index
    %18 = arith.index_cast %11 : i32 to index
    %c0_5 = arith.constant 0 : index
    %19 = vector.load %arg2[%c2_4, %18, %c0_5] : memref<6x4x128xf32, #tpu.memory_space<vmem>>, vector<1x4x128xf32>
    %20 = vector.shape_cast %19 : vector<1x4x128xf32> to vector<4x128xf32>
    %c3_6 = arith.constant 3 : index
    %21 = arith.index_cast %11 : i32 to index
    %c0_7 = arith.constant 0 : index
    %22 = vector.load %arg2[%c3_6, %21, %c0_7] : memref<6x4x128xf32, #tpu.memory_space<vmem>>, vector<1x4x128xf32>
    %23 = vector.shape_cast %22 : vector<1x4x128xf32> to vector<4x128xf32>
    %c5_8 = arith.constant 5 : index
    %24 = arith.index_cast %11 : i32 to index
    %c0_9 = arith.constant 0 : index
    %25 = vector.load %arg2[%c5_8, %24, %c0_9] : memref<6x4x128xf32, #tpu.memory_space<vmem>>, vector<1x4x128xf32>
    %26 = vector.shape_cast %25 : vector<1x4x128xf32> to vector<4x128xf32>
    %27 = arith.mulf %14, %14 : vector<4x128xf32>
    %28 = arith.mulf %17, %17 : vector<4x128xf32>
    %29 = arith.addf %27, %28 : vector<4x128xf32>
    %30 = arith.mulf %20, %20 : vector<4x128xf32>
    %31 = arith.addf %29, %30 : vector<4x128xf32>
    %cst = arith.constant 9.99999997E-7 : f32
    %32 = vector.broadcast %cst : f32 to vector<4x128xf32>
    %33 = arith.addf %31, %32 : vector<4x128xf32>
    %34 = math.rsqrt %33 : vector<4x128xf32>
    %35 = arith.mulf %31, %34 : vector<4x128xf32>
    %36 = arith.mulf %20, %34 : vector<4x128xf32>
    %37 = math.sqrt %29 : vector<4x128xf32>
    %38 = arith.mulf %37, %34 : vector<4x128xf32>
    %39 = arith.mulf %26, %36 : vector<4x128xf32>
    %40 = arith.mulf %23, %38 : vector<4x128xf32>
    %41 = arith.subf %39, %40 : vector<4x128xf32>
    %cst_10 = arith.constant 2.000000e+00 : f32
    %42 = vector.broadcast %cst_10 : f32 to vector<4x128xf32>
    %43 = arith.mulf %42, %26 : vector<4x128xf32>
    %44 = arith.mulf %43, %35 : vector<4x128xf32>
    %45 = arith.mulf %44, %20 : vector<4x128xf32>
    %46 = arith.subf %45, %41 : vector<4x128xf32>
    %cst_11 = arith.constant 0.000000e+00 : f32
    %cst_12 = arith.constant 1.000000e+00 : f32
    %47 = vector.broadcast %cst_11 : f32 to vector<4x128xf32>
    %48 = arith.maximumf %47, %41 : vector<4x128xf32>
    %49 = vector.broadcast %cst_12 : f32 to vector<4x128xf32>
    %50 = arith.minimumf %49, %48 : vector<4x128xf32>
    %cst_13 = arith.constant 0.000000e+00 : f32
    %cst_14 = arith.constant 1.000000e+00 : f32
    %51 = vector.broadcast %cst_13 : f32 to vector<4x128xf32>
    %52 = arith.maximumf %51, %46 : vector<4x128xf32>
    %53 = vector.broadcast %cst_14 : f32 to vector<4x128xf32>
    %54 = arith.minimumf %53, %52 : vector<4x128xf32>
    %cst_15 = arith.constant 9.99999997E-7 : f32
    %55 = vector.broadcast %cst_15 : f32 to vector<4x128xf32>
    %56 = arith.addf %30, %55 : vector<4x128xf32>
    %57 = arith.divf %29, %56 : vector<4x128xf32>
    %cst_16 = arith.constant 0.000000e+00 : f32
    %58 = vector.broadcast %cst_16 : f32 to vector<4x128xf32>
    %59 = arith.subf %58, %57 : vector<4x128xf32>
    %60 = vector.broadcast %7 : f32 to vector<4x128xf32>
    %61 = arith.mulf %59, %60 : vector<4x128xf32>
    %62 = math.exp %61 : vector<4x128xf32>
    %cst_17 = arith.constant 2.000000e+00 : f32
    %63 = vector.broadcast %cst_17 : f32 to vector<4x128xf32>
    %64 = arith.mulf %63, %20 : vector<4x128xf32>
    %65 = arith.minimumf %50, %54 : vector<4x128xf32>
    %66 = arith.mulf %64, %65 : vector<4x128xf32>
    %cst_18 = arith.constant 9.99999997E-7 : f32
    %67 = vector.broadcast %cst_18 : f32 to vector<4x128xf32>
    %68 = arith.addf %26, %67 : vector<4x128xf32>
    %69 = arith.divf %66, %68 : vector<4x128xf32>
    %cst_19 = arith.constant 1.000000e+00 : f32
    %70 = vector.broadcast %cst_19 : f32 to vector<4x128xf32>
    %71 = arith.minimumf %69, %70 : vector<4x128xf32>
    %cst_20 = arith.constant 1.000000e+00 : f32
    %72 = vector.broadcast %cst_20 : f32 to vector<4x128xf32>
    %73 = arith.subf %72, %26 : vector<4x128xf32>
    %74 = arith.mulf %73, %73 : vector<4x128xf32>
    %75 = vector.broadcast %9 : f32 to vector<4x128xf32>
    %76 = arith.mulf %75, %74 : vector<4x128xf32>
    %77 = arith.mulf %76, %74 : vector<4x128xf32>
    %78 = arith.mulf %77, %73 : vector<4x128xf32>
    %79 = vector.broadcast %8 : f32 to vector<4x128xf32>
    %80 = arith.addf %79, %78 : vector<4x128xf32>
    %81 = vector.broadcast %6 : f32 to vector<4x128xf32>
    %82 = arith.mulf %81, %30 : vector<4x128xf32>
    %83 = arith.mulf %82, %30 : vector<4x128xf32>
    %cst_21 = arith.constant 9.99999997E-7 : f32
    %84 = vector.broadcast %cst_21 : f32 to vector<4x128xf32>
    %85 = arith.addf %83, %84 : vector<4x128xf32>
    %cst_22 = arith.constant 3.14159274 : f32
    %86 = vector.broadcast %cst_22 : f32 to vector<4x128xf32>
    %87 = arith.mulf %86, %50 : vector<4x128xf32>
    %88 = arith.mulf %87, %54 : vector<4x128xf32>
    %cst_23 = arith.constant 9.99999997E-7 : f32
    %89 = vector.broadcast %cst_23 : f32 to vector<4x128xf32>
    %90 = arith.addf %88, %89 : vector<4x128xf32>
    %91 = arith.mulf %85, %90 : vector<4x128xf32>
    %92 = arith.mulf %62, %71 : vector<4x128xf32>
    %93 = arith.mulf %92, %80 : vector<4x128xf32>
    %94 = arith.divf %93, %91 : vector<4x128xf32>
    %95 = vector.broadcast %3 : f32 to vector<4x128xf32>
    %96 = arith.mulf %94, %95 : vector<4x128xf32>
    %97 = vector.broadcast %0 : f32 to vector<4x128xf32>
    %98 = arith.addf %97, %96 : vector<4x128xf32>
    %c0_24 = arith.constant 0 : index
    %99 = arith.index_cast %11 : i32 to index
    %c0_25 = arith.constant 0 : index
    %100 = vector.load %arg3[%c0_24, %99, %c0_25] : memref<3x4x128xf32, #tpu.memory_space<vmem>>, vector<1x4x128xf32>
    %101 = vector.shape_cast %100 : vector<1x4x128xf32> to vector<4x128xf32>
    %102 = vector.shape_cast %98 : vector<4x128xf32> to vector<1x4x128xf32>
    tpu.vector_store %arg3[%c0_24, %99, %c0_25], %102 {strides = array<i32>} : memref<3x4x128xf32, #tpu.memory_space<vmem>>, vector<1x4x128xf32>,
    %103 = vector.broadcast %4 : f32 to vector<4x128xf32>
    %104 = arith.mulf %94, %103 : vector<4x128xf32>
    %105 = vector.broadcast %1 : f32 to vector<4x128xf32>
    %106 = arith.addf %105, %104 : vector<4x128xf32>
    %c1_26 = arith.constant 1 : index
    %107 = arith.index_cast %11 : i32 to index
    %c0_27 = arith.constant 0 : index
    %108 = vector.load %arg3[%c1_26, %107, %c0_27] : memref<3x4x128xf32, #tpu.memory_space<vmem>>, vector<1x4x128xf32>
    %109 = vector.shape_cast %108 : vector<1x4x128xf32> to vector<4x128xf32>
    %110 = vector.shape_cast %106 : vector<4x128xf32> to vector<1x4x128xf32>
    tpu.vector_store %arg3[%c1_26, %107, %c0_27], %110 {strides = array<i32>} : memref<3x4x128xf32, #tpu.memory_space<vmem>>, vector<1x4x128xf32>,
    %111 = vector.broadcast %5 : f32 to vector<4x128xf32>
    %112 = arith.mulf %94, %111 : vector<4x128xf32>
    %113 = vector.broadcast %2 : f32 to vector<4x128xf32>
    %114 = arith.addf %113, %112 : vector<4x128xf32>
    %c2_28 = arith.constant 2 : index
    %115 = arith.index_cast %11 : i32 to index
    %c0_29 = arith.constant 0 : index
    %116 = vector.load %arg3[%c2_28, %115, %c0_29] : memref<3x4x128xf32, #tpu.memory_space<vmem>>, vector<1x4x128xf32>
    %117 = vector.shape_cast %116 : vector<1x4x128xf32> to vector<4x128xf32>
    %118 = vector.shape_cast %114 : vector<4x128xf32> to vector<1x4x128xf32>
    tpu.vector_store %arg3[%c2_28, %115, %c0_29], %118 {strides = array<i32>} : memref<3x4x128xf32, #tpu.memory_space<vmem>>, vector<1x4x128xf32>,
    %c1_i32 = arith.constant 1 : i32
    return
  }
  func.func @transform_0(%arg0: i32) -> i32 {
    %c0_i32 = arith.constant 0 : i32
    %c0_i32_0 = arith.constant 0 : i32
    return %c0_i32 : i32
  }
  func.func @transform_1(%arg0: i32) -> (i32, i32, i32) {
    %c0_i32 = arith.constant 0 : i32
    %c0_i32_0 = arith.constant 0 : i32
    %c0_i32_1 = arith.constant 0 : i32
    return %c0_i32, %arg0, %c0_i32_0 : i32, i32, i32
  }
  func.func @transform_2(%arg0: i32) -> (i32, i32, i32) {
    %c0_i32 = arith.constant 0 : i32
    %c0_i32_0 = arith.constant 0 : i32
    %c0_i32_1 = arith.constant 0 : i32
    return %c0_i32, %arg0, %c0_i32_0 : i32, i32, i32
  }
}

</mosaic_0001>

<llo_original>
// kernel: tpu_custom_call.1
$region0: #{tpu_custom_call.1}
  #allocation0 [shape = 'u32[]', space=smem, size = 0x4, offset = 0x4, fixed_abs, tag = 'smem constant byte address 0x4 - core index']
  #allocation1 [shape = 'u32[144,128]{1,0:T(1,128)}', space=vmem, size = 0x12000, scoped, tag = 'internal scratch']
  %s0 = inlined_call_operand.hbm [shape: f32[10], index: 0, kind: input, shape index: {}]
  %s1 = inlined_call_operand.hbm [shape: f32[6,4,128], index: 1, kind: input, shape index: {}]
  %s2 = inlined_call_operand.hbm [shape: f32[3,4,128], index: 2, kind: output, shape index: {}]
  %s3 = sld [smem:[#allocation0]]
  $region26: #{tpu_custom_call.1} parent=0
    _
  %s5 = ssub.s32 1, %s3
  %s6 = scalar_select 0, %s5, %s3
  $region1: #{tpu_custom_call.1} parent=0
    #allocation2 [shape = 'u8[512]{0}', space=smem, size = 0x200, scoped, tag = 'input window, operand 0, single buffered']
    #allocation3 [shape = 's32[1]{0}', space=sflag, size = 0x4, scoped, tag = 'scoped memory for tpu_custom_call.1']
    #allocation4 [shape = 's32[1]{0}', space=sflag, size = 0x4, scoped, tag = 'scoped memory for tpu_custom_call.1']
    #allocation5 [shape = 's32[1]{0}', space=sflag, size = 0x4, scoped, tag = 'scoped memory for tpu_custom_call.1']
    #allocation6 [shape = 'u8[12288]{0}', space=vmem, size = 0x3000, scoped, tag = 'input window, operand 1, single buffered']
    #allocation7 [shape = 'u8[6144]{0}', space=vmem, size = 0x1800, scoped, tag = 'output window, operand 0, single buffered']
    %7 = vsyncpa [#allocation5], 0
    %8 = vsyncpa [#allocation3], 0
    %9 = vsyncpa [#allocation4], 0
    // Predicated region
    $region2: #{tpu_custom_call.1} parent=1 // pred_check
      _
    $region3: #{tpu_custom_call.1} parent=1 // pred_check_branch
      %11 = sbr.rel (0) target = $region5
    $region4: #{tpu_custom_call.1} parent=1 // pred_region
      %s13 = ssub.s32 16, 16
      %14 = vsyncadd [#allocation5], %s13
      %17 = dma.hbm_to_smem %s0, 16, [#allocation2], [#allocation5]
    $region5: #{tpu_custom_call.1} parent=1 // pred_fallthru
      _
    // Predicated region
    $region6: #{tpu_custom_call.1} parent=1 // pred_check
      _
    $region7: #{tpu_custom_call.1} parent=1 // pred_check_branch
      %19 = sbr.rel (0) target = $region9
    $region8: #{tpu_custom_call.1} parent=1 // pred_region
      %s21 = ssub.s32 384, 384
      %22 = vsyncadd [#allocation3], %s21
      %s23 = sshll.u32 [#allocation6], 4
      %s24 = int_to_ptr.vmem [resolvable:$true] %s23
      %29 = dma.hbm_to_vmem [thread:$0]  %s1, 384, %s24, [#allocation3], 64, 64, 4
    $region9: #{tpu_custom_call.1} parent=1 // pred_fallthru
      _
    // Predicated region
    $region10: #{tpu_custom_call.1} parent=1 // pred_check
      _
    $region11: #{tpu_custom_call.1} parent=1 // pred_check_branch
      %31 = sbr.rel (0) target = $region13
    $region12: #{tpu_custom_call.1} parent=1 // pred_region
      %32 = dma.done [#allocation5], 16
    $region13: #{tpu_custom_call.1} parent=1 // pred_fallthru
      _
    // Predicated region
    $region14: #{tpu_custom_call.1} parent=1 // pred_check
      _
    $region15: #{tpu_custom_call.1} parent=1 // pred_check_branch
      %34 = sbr.rel (0) target = $region17
    $region16: #{tpu_custom_call.1} parent=1 // pred_region
      %35 = dma.done [#allocation3], 384
    $region17: #{tpu_custom_call.1} parent=1 // pred_fallthru
      _
    %36 = sfence
    %s37 = sld [smem:[#allocation2]]
    %s38 = sld [smem:[#allocation2 + $0x1]]
    %s39 = sld [smem:[#allocation2 + $0x2]]
    %s40 = sld [smem:[#allocation2 + $0x3]]
    %s41 = sld [smem:[#allocation2 + $0x4]]
    %s42 = sld [smem:[#allocation2 + $0x5]]
    %s43 = sld [smem:[#allocation2 + $0x6]]
    %s44 = sld [smem:[#allocation2 + $0x7]]
    %s45 = sld [smem:[#allocation2 + $0x8]]
    %s46 = sld [smem:[#allocation2 + $0x9]]
    %v47 = vld [vmem:[#allocation6] sm:$0xf]
    %s48 = sadd.s32 0, 4
    %s49 = scalar_lea.vmem [#allocation6], %s48
    %v50 = vld [vmem:[%s49] sm:$0xf]
    %s51 = sadd.s32 0, 8
    %s52 = scalar_lea.vmem [#allocation6], %s51
    %v53 = vld [vmem:[%s52] sm:$0xf]
    %s54 = sadd.s32 0, 12
    %s55 = scalar_lea.vmem [#allocation6], %s54
    %v56 = vld [vmem:[%s55] sm:$0xf]
    %s57 = sadd.s32 0, 20
    %s58 = scalar_lea.vmem [#allocation6], %s57
    %v59 = vld [vmem:[%s58] sm:$0xf]
    %v60 = vmul.f32 %v47, %v47
    %v61 = vmul.f32 %v50, %v50
    %v62 = vadd.f32 %v60, %v61
    %v63 = vmul.f32 %v53, %v53
    %v64 = vadd.f32 %v62, %v63
    %v65 = vadd.f32 %v64, 1e-06
    %v66 = vrsqrt.pop %v65
    %v67 = vmul.f32 %v64, %v66
    %v68 = vmul.f32 %v53, %v66
    %v69 = vrsqrt.pop %v62
    %v70 = vmul.f32 %v62, %v69
    %vm71 = vcmp.eq.f32.partialorder %v62, inf
    %v72 = vsel %vm71, %v62, %v70
    %vm73 = vcmp.eq.f32.partialorder %v62, 0.0
    %v74 = vand.u32 %v62, 2147483648
    %v75 = vsel %vm73, %v74, %v72
    %v76 = vmul.f32 %v75, %v66
    %v77 = vmul.f32 %v59, %v68
    %v78 = vmul.f32 %v56, %v76
    %v79 = vsub.f32 %v77, %v78
    %v80 = vmul.f32 %v59, 2.0
    %v81 = vmul.f32 %v80, %v67
    %v82 = vmul.f32 %v81, %v53
    %v83 = vsub.f32 %v82, %v79
    %v84 = vmax.f32 %v79, 0.0
    %v85 = vmin.f32 %v84, 1.0
    %v86 = vmax.f32 %v83, 0.0
    %v87 = vmin.f32 %v86, 1.0
    %v88 = vadd.f32 %v63, 1e-06
    %v89 = vrcp.pop %v88
    %v90 = vmul.f32 %v62, %v89
    %v91 = vsub.f32 0.0, %v90
    %v92 = vstv %s44
    %v93 = vmul.f32 %v91, %v92
    %v94 = vmul.f32 %v93, 1.442695
    %v95 = vpow.pop %v94
    %v96 = vmul.f32 %v53, 2.0
    %v97 = vmin.f32 %v85, %v87
    %v98 = vmul.f32 %v96, %v97
    %v99 = vadd.f32 %v59, 1e-06
    %v100 = vrcp.pop %v99
    %v101 = vmul.f32 %v98, %v100
    %v102 = vmin.f32 %v101, 1.0
    %v103 = vsub.f32 1.0, %v59
    %v104 = vmul.f32 %v103, %v103
    %v105 = vstv %s46
    %v106 = vmul.f32 %v105, %v104
    %v107 = vmul.f32 %v106, %v104
    %v108 = vmul.f32 %v107, %v103
    %v109 = vstv %s45
    %v110 = vadd.f32 %v109, %v108
    %v111 = vstv %s43
    %v112 = vmul.f32 %v111, %v63
    %v113 = vmul.f32 %v112, %v63
    %v114 = vadd.f32 %v113, 1e-06
    %v115 = vmul.f32 %v85, 3.1415927
    %v116 = vmul.f32 %v115, %v87
    %v117 = vadd.f32 %v116, 1e-06
    %v118 = vmul.f32 %v114, %v117
    %v119 = vmul.f32 %v95, %v102
    %v120 = vmul.f32 %v119, %v110
    %v121 = vrcp.pop %v118
    %v122 = vmul.f32 %v120, %v121
    %v123 = vstv %s40
    %v124 = vmul.f32 %v122, %v123
    %v125 = vstv %s37
    %v126 = vadd.f32 %v125, %v124
    %127 = vst [vmem:[#allocation7] sm:$0xf] %v126
    %v128 = vstv %s41
    %v129 = vmul.f32 %v122, %v128
    %v130 = vstv %s38
    %v131 = vadd.f32 %v130, %v129
    %s132 = scalar_lea.vmem [#allocation7], %s48
    %133 = vst [vmem:[%s132] sm:$0xf] %v131
    %v134 = vstv %s42
    %v135 = vmul.f32 %v122, %v134
    %v136 = vstv %s39
    %v137 = vadd.f32 %v136, %v135
    %s138 = scalar_lea.vmem [#allocation7], %s51
    %139 = vst [vmem:[%s138] sm:$0xf] %v137
    // Predicated region
    $region18: #{tpu_custom_call.1} parent=1 // pred_check
      _
    $region19: #{tpu_custom_call.1} parent=1 // pred_check_branch
      %141 = sbr.rel (0) target = $region21
    $region20: #{tpu_custom_call.1} parent=1 // pred_region
      %s143 = ssub.s32 192, 192
      %144 = vsyncadd [#allocation4], %s143
      %s145 = sshll.u32 [#allocation7], 4
      %s146 = int_to_ptr.vmem [resolvable:$true] %s145
      %151 = dma.vmem_to_hbm [thread:$0]  %s146, 192, %s2, [#allocation4], 64, 64, 4
    $region21: #{tpu_custom_call.1} parent=1 // pred_fallthru
      _
    // Predicated region
    $region22: #{tpu_custom_call.1} parent=1 // pred_check
      _
    $region23: #{tpu_custom_call.1} parent=1 // pred_check_branch
      %153 = sbr.rel (0) target = $region25
    $region24: #{tpu_custom_call.1} parent=1 // pred_region
      %154 = dma.done [#allocation4], 192
    $region25: #{tpu_custom_call.1} parent=1 // pred_fallthru
      _
    %155 = vsyncpa [#allocation3], 1
    %156 = vsyncpa [#allocation4], 1
    %157 = vsyncpa [#allocation5], 1

</llo_original>
